<compile_context>
chip_gen: v6e
topology: v6e:2x2x1
jax: 0.10.0
libtpu: 0.0.40
codegen_flags: <defaults>
</compile_context>

<pallas_src>
import jax
import jax.numpy as jnp
import numpy as np
from jax import lax
from jax.experimental import pallas as pl
from jax.experimental.pallas import tpu as pltpu

BN_EPS = 1e-5
K_PAD = 32          # C_in padded up to a multiple of the bf16 sublane tile (16)
OUT_CH = 128


def _cnn_kernel(x_ref, w_ref, vec_ref, o_ref):
    # Full arrays resident in VMEM; no grid.
    x = x_ref[...].astype(jnp.bfloat16)       # (B, 32)  zero-padded input
    w1 = w_ref[0:K_PAD, :]                    # (32, 128) bf16, tile-aligned view
    w2 = w_ref[K_PAD:, :]                     # (128, 128) bf16, tile-aligned view
    vecs = vec_ref[...]                       # (4, 128) f32 packed vectors
    b1 = vecs[0:1, :]
    gamma = vecs[1:2, :]
    beta = vecs[2:3, :]
    b2 = vecs[3:4, :]

    # conv1(C_in->128, k=6, padding='same', L=1)  ==  x @ W1[:, :, 2].T + b1
    h1 = jnp.dot(x, w1, preferred_element_type=jnp.float32) + b1
    h1 = jnp.maximum(h1, 0.0)                                   # ReLU

    # BatchNorm1d(128), training mode: biased batch stats, two-pass (centered)
    # variance for numerical safety on the non-negative post-ReLU activations.
    inv_b = 1.0 / h1.shape[0]
    mean = jnp.sum(h1, axis=0, keepdims=True) * inv_b
    d = h1 - mean
    var = jnp.sum(d * d, axis=0, keepdims=True) * inv_b
    h1n = d * lax.rsqrt(var + BN_EPS) * gamma + beta

    # conv2(128->128, k=6, padding='same', L=1)  ==  h @ W2[:, :, 2].T + b2
    h2 = jnp.dot(h1n.astype(jnp.bfloat16), w2,
                 preferred_element_type=jnp.float32) + b2
    o_ref[...] = jnp.maximum(h2, 0.0)        # ReLU; Flatten is identity


def cnn_forward(x_flat, params):
    """x_flat: (B, C_in) float32.  Returns (B, 128) float32."""
    w, vecs = params                          # (160, 128) bf16, (4, 128) f32
    B, c_in = x_flat.shape
    # Tile-align the contraction dim: zero-extend C_in -> K_PAD (matches the
    # zero-padded rows of w1, so the result is unchanged).
    x_pad = jnp.pad(x_flat, ((0, 0), (0, K_PAD - c_in)))

    vmem = pl.BlockSpec(memory_space=pltpu.MemorySpace.VMEM)
    cost = pl.CostEstimate(
        flops=2 * B * (K_PAD + OUT_CH) * OUT_CH,
        transcendentals=OUT_CH,                       # rsqrt over 128 features
        bytes_accessed=(B * K_PAD * 4                 # x
                        + w.size * 2                  # merged bf16 weights
                        + vecs.size * 4               # packed vectors
                        + B * OUT_CH * 4),            # output
    )
    # TODO(synk): if this module is called many times per step, fold the calls
    # into one pallas_call with a leading grid axis to amortize per-call cost.
    return pl.pallas_call(
        _cnn_kernel,
        out_shape=jax.ShapeDtypeStruct((B, OUT_CH), jnp.float32),
        in_specs=[vmem, vmem, vmem],
        out_specs=vmem,
        cost_estimate=cost,
    )(x_pad, w, vecs)


def make_params(key, in_channels):
    """Deterministic init mimicking PyTorch Conv1d/BatchNorm1d defaults.

    Full conv weights (out, in, k=6) are created, but only the tap at index 2
    (the 'same'-padding left offset) touches the length-1 input.  That slice is
    pre-transposed to (in, out), zero-padded along the contraction dim to a
    bf16-tile multiple, and merged with the second conv's slice into a single
    (160, 128) bf16 operand.  The four per-channel vectors (b1, gamma, beta,
    b2) are packed into one (4, 128) f32 array."""
    k = 6
    keys = jax.random.split(key, 4)

    # conv1: weight (128, in_channels, 6), bias (128,)
    bound1 = 1.0 / np.sqrt(in_channels * k)
    w1_full = jax.random.uniform(keys[0], (OUT_CH, in_channels, k),
                                 jnp.float32, -bound1, bound1)
    b1 = jax.random.uniform(keys[1], (1, OUT_CH), jnp.float32, -bound1, bound1)

    # BatchNorm1d(128): gamma=1, beta=0 (PyTorch default init)
    gamma = jnp.ones((1, OUT_CH), jnp.float32)
    beta = jnp.zeros((1, OUT_CH), jnp.float32)

    # conv2: weight (128, 128, 6), bias (128,)
    bound2 = 1.0 / np.sqrt(OUT_CH * k)
    w2_full = jax.random.uniform(keys[2], (OUT_CH, OUT_CH, k),
                                 jnp.float32, -bound2, bound2)
    b2 = jax.random.uniform(keys[3], (1, OUT_CH), jnp.float32, -bound2, bound2)

    # Only kernel tap index 2 is active for L == 1 with 'same' padding.
    w1t = jnp.transpose(w1_full[:, :, 2])                     # (C_in, 128) f32
    w1t = jnp.pad(w1t, ((0, K_PAD - in_channels), (0, 0)))    # (32, 128)
    w2t = jnp.transpose(w2_full[:, :, 2])                     # (128, 128)
    w = jnp.concatenate([w1t, w2t], axis=0).astype(jnp.bfloat16)  # (160, 128)

    vecs = jnp.concatenate([b1, gamma, beta, b2], axis=0)     # (4, 128) f32
    return (w, vecs)


def reference_forward(x_flat, params):
    """Plain-JAX reference of the same math (bf16 matmuls, f32 accum)."""
    w, vecs = params
    b1, gamma, beta, b2 = vecs[0:1], vecs[1:2], vecs[2:3], vecs[3:4]
    B, c_in = x_flat.shape
    xb = jnp.pad(x_flat, ((0, 0), (0, K_PAD - c_in))).astype(jnp.bfloat16)
    w1, w2 = w[:K_PAD, :], w[K_PAD:, :]
    h1 = jnp.maximum(jnp.dot(xb, w1, preferred_element_type=jnp.float32) + b1,
                     0.0)
    mean = jnp.mean(h1, axis=0, keepdims=True)
    d = h1 - mean
    var = jnp.mean(d * d, axis=0, keepdims=True)
    h1n = d * lax.rsqrt(var + BN_EPS) * gamma + beta
    h2 = jnp.dot(h1n.astype(jnp.bfloat16), w2,
                 preferred_element_type=jnp.float32) + b2
    return jnp.maximum(h2, 0.0)


if __name__ == "__main__":
    key = jax.random.PRNGKey(0)
    kx, kp = jax.random.split(key)

    # 'method' branch of the PyTorch module: 20 input channels.
    in_channels = 20

    # PyTorch input would be e.g. (B, 4, 5); forward views it to (B, 20, 1).
    batch = 8
    x = jax.random.normal(kx, (batch, 4, 5), jnp.float32)
    x_flat = x.reshape(batch, -1)    # == inputs.view(B, -1, 1) squeezed on L
    assert x_flat.shape[1] == in_channels

    params = make_params(kp, in_channels)

    out = jax.jit(cnn_forward)(x_flat, params)
    out = jax.block_until_ready(out)

    ref = reference_forward(x_flat, params)
    np.testing.assert_allclose(np.asarray(out), np.asarray(ref),
                               rtol=2e-3, atol=2e-3)
    assert out.shape == (batch, 128)

    print("KERNEL_OK")
</pallas_src>

<mosaic_0001>
module attributes {stable_mosaic.version = 11 : i64} {
  func.func @_cnn_kernel(%arg0: memref<8x32xf32, #tpu.memory_space<vmem>>, %arg1: memref<160x128xbf16, #tpu.memory_space<vmem>>, %arg2: memref<4x128xf32, #tpu.memory_space<vmem>>, %arg3: memref<8x128xf32, #tpu.memory_space<vmem>>) attributes {dimension_semantics = [], scalar_prefetch = 0 : i64, scratch_operands = 0 : i64, tpu.core_type = #tpu.core_type<tc>} {
    %c0 = arith.constant 0 : index
    %c0_0 = arith.constant 0 : index
    %0 = vector.load %arg0[%c0, %c0_0] : memref<8x32xf32, #tpu.memory_space<vmem>>, vector<8x32xf32>
    %1 = arith.truncf %0 : vector<8x32xf32> to vector<8x32xbf16>
    %c0_1 = arith.constant 0 : index
    %c0_2 = arith.constant 0 : index
    %2 = vector.load %arg1[%c0_1, %c0_2] : memref<160x128xbf16, #tpu.memory_space<vmem>>, vector<32x128xbf16>
    %c32 = arith.constant 32 : index
    %c0_3 = arith.constant 0 : index
    %3 = vector.load %arg1[%c32, %c0_3] : memref<160x128xbf16, #tpu.memory_space<vmem>>, vector<128x128xbf16>
    %c0_4 = arith.constant 0 : index
    %c0_5 = arith.constant 0 : index
    %4 = vector.load %arg2[%c0_4, %c0_5] : memref<4x128xf32, #tpu.memory_space<vmem>>, vector<4x128xf32>
    %5 = vector.extract_strided_slice %4 {offsets = [0, 0], sizes = [1, 128], strides = [1, 1]} : vector<4x128xf32> to vector<1x128xf32>
    %6 = vector.extract_strided_slice %4 {offsets = [1, 0], sizes = [1, 128], strides = [1, 1]} : vector<4x128xf32> to vector<1x128xf32>
    %7 = vector.extract_strided_slice %4 {offsets = [2, 0], sizes = [1, 128], strides = [1, 1]} : vector<4x128xf32> to vector<1x128xf32>
    %8 = vector.extract_strided_slice %4 {offsets = [3, 0], sizes = [1, 128], strides = [1, 1]} : vector<4x128xf32> to vector<1x128xf32>
    %cst = arith.constant dense<0.000000e+00> : vector<8x128xf32>
    %9 = tpu.matmul %1, %2, %cst {dimension_numbers = #tpu.dot_dimension_numbers<[1], [0], [0], [1], [0, 0, 1, 1], [], []>} : vector<8x32xbf16>, vector<32x128xbf16>, vector<8x128xf32> -> vector<8x128xf32>
    %10 = vector.broadcast %5 : vector<1x128xf32> to vector<8x128xf32>
    %11 = arith.addf %9, %10 : vector<8x128xf32>
    %cst_6 = arith.constant 0.000000e+00 : f32
    %12 = vector.broadcast %cst_6 : f32 to vector<8x128xf32>
    %13 = arith.maximumf %11, %12 : vector<8x128xf32>
    %cst_7 = arith.constant dense<0.000000e+00> : vector<128xf32>
    %14 = vector.multi_reduction <add>, %13, %cst_7 [0] : vector<8x128xf32> to vector<128xf32>
    %15 = vector.shape_cast %14 : vector<128xf32> to vector<1x128xf32>
    %cst_8 = arith.constant 1.250000e-01 : f32
    %16 = vector.broadcast %cst_8 : f32 to vector<1x128xf32>
    %17 = arith.mulf %15, %16 : vector<1x128xf32>
    %18 = vector.broadcast %17 : vector<1x128xf32> to vector<8x128xf32>
    %19 = arith.subf %13, %18 : vector<8x128xf32>
    %20 = arith.mulf %19, %19 : vector<8x128xf32>
    %cst_9 = arith.constant dense<0.000000e+00> : vector<128xf32>
    %21 = vector.multi_reduction <add>, %20, %cst_9 [0] : vector<8x128xf32> to vector<128xf32>
    %22 = vector.shape_cast %21 : vector<128xf32> to vector<1x128xf32>
    %cst_10 = arith.constant 1.250000e-01 : f32
    %23 = vector.broadcast %cst_10 : f32 to vector<1x128xf32>
    %24 = arith.mulf %22, %23 : vector<1x128xf32>
    %cst_11 = arith.constant 9.99999974E-6 : f32
    %25 = vector.broadcast %cst_11 : f32 to vector<1x128xf32>
    %26 = arith.addf %24, %25 : vector<1x128xf32>
    %27 = math.rsqrt %26 : vector<1x128xf32>
    %28 = vector.broadcast %27 : vector<1x128xf32> to vector<8x128xf32>
    %29 = arith.mulf %19, %28 : vector<8x128xf32>
    %30 = vector.broadcast %6 : vector<1x128xf32> to vector<8x128xf32>
    %31 = arith.mulf %29, %30 : vector<8x128xf32>
    %32 = vector.broadcast %7 : vector<1x128xf32> to vector<8x128xf32>
    %33 = arith.addf %31, %32 : vector<8x128xf32>
    %34 = arith.truncf %33 : vector<8x128xf32> to vector<8x128xbf16>
    %cst_12 = arith.constant dense<0.000000e+00> : vector<8x128xf32>
    %35 = tpu.matmul %34, %3, %cst_12 {dimension_numbers = #tpu.dot_dimension_numbers<[1], [0], [0], [1], [0, 0, 1, 1], [], []>} : vector<8x128xbf16>, vector<128x128xbf16>, vector<8x128xf32> -> vector<8x128xf32>
    %36 = vector.broadcast %8 : vector<1x128xf32> to vector<8x128xf32>
    %37 = arith.addf %35, %36 : vector<8x128xf32>
    %cst_13 = arith.constant 0.000000e+00 : f32
    %38 = vector.broadcast %cst_13 : f32 to vector<8x128xf32>
    %39 = arith.maximumf %37, %38 : vector<8x128xf32>
    %c0_14 = arith.constant 0 : index
    %c0_15 = arith.constant 0 : index
    %40 = vector.load %arg3[%c0_14, %c0_15] : memref<8x128xf32, #tpu.memory_space<vmem>>, vector<8x128xf32>
    tpu.vector_store %arg3[%c0_14, %c0_15], %39 {strides = array<i32>} : memref<8x128xf32, #tpu.memory_space<vmem>>, vector<8x128xf32>,
    return
  }
}

</mosaic_0001>

<llo_original>
// kernel: cnn_forward.1
$region0: #{cnn_forward.1}
  #allocation0 [shape = 'u32[]', space=smem, size = 0x4, offset = 0x4, fixed_abs, tag = 'smem constant byte address 0x4 - core index']
  #allocation1 [shape = 'u32[144,128]{1,0:T(1,128)}', space=vmem, size = 0x12000, scoped, tag = 'internal scratch']
  %s0 = inlined_call_operand.vmem [shape: f32[8,32], index: 0, kind: input, shape index: {}]
  %s1 = inlined_call_operand.hbm [shape: bf16[160,128], index: 1, kind: input, shape index: {}]
  %s2 = inlined_call_operand.vmem [shape: f32[4,128], index: 2, kind: input, shape index: {}]
  %s3 = inlined_call_operand.hbm [shape: f32[8,128], index: 3, kind: output, shape index: {}]
  %s4 = sld [smem:[#allocation0]]
  $region26: #{cnn_forward.1} parent=0
    _
  %s6 = ssub.s32 1, %s4
  %s7 = scalar_select 0, %s6, %s4
  $region1: #{cnn_forward.1} parent=0
    #allocation2 [shape = 'u8[40960]{0}', space=vmem, size = 0xa000, scoped, tag = 'input window, operand 1, single buffered']
    #allocation3 [shape = 's32[1]{0}', space=sflag, size = 0x4, scoped, tag = 'scoped memory for cnn_forward.1']
    #allocation4 [shape = 's32[1]{0}', space=sflag, size = 0x4, scoped, tag = 'scoped memory for cnn_forward.1']
    #allocation5 [shape = 'u8[4096]{0}', space=vmem, size = 0x1000, scoped, tag = 'output window, operand 0, single buffered']
    %8 = vsyncpa [#allocation3], 0
    %9 = vsyncpa [#allocation4], 0
    // Predicated region
    $region2: #{cnn_forward.1} parent=1 // pred_check
      _
    $region3: #{cnn_forward.1} parent=1 // pred_check_branch
      %11 = sbr.rel (0) target = $region5
    $region4: #{cnn_forward.1} parent=1 // pred_region
      _
    $region5: #{cnn_forward.1} parent=1 // pred_fallthru
      _
    // Predicated region
    $region6: #{cnn_forward.1} parent=1 // pred_check
      _
    $region7: #{cnn_forward.1} parent=1 // pred_check_branch
      %13 = sbr.rel (0) target = $region9
    $region8: #{cnn_forward.1} parent=1 // pred_region
      %s15 = ssub.s32 1280, 1280
      %16 = vsyncadd [#allocation3], %s15
      %s17 = sshll.u32 [#allocation2], 4
      %s18 = int_to_ptr.vmem [resolvable:$true] %s17
      %23 = dma.hbm_to_vmem [thread:$0]  %s1, 1280, %s18, [#allocation3], 64, 64, 4
    $region9: #{cnn_forward.1} parent=1 // pred_fallthru
      _
    // Predicated region
    $region10: #{cnn_forward.1} parent=1 // pred_check
      _
    $region11: #{cnn_forward.1} parent=1 // pred_check_branch
      %25 = sbr.rel (0) target = $region13
    $region12: #{cnn_forward.1} parent=1 // pred_region
      _
    $region13: #{cnn_forward.1} parent=1 // pred_fallthru
      _
    // Predicated region
    $region14: #{cnn_forward.1} parent=1 // pred_check
      _
    $region15: #{cnn_forward.1} parent=1 // pred_check_branch
      %27 = sbr.rel (0) target = $region17
    $region16: #{cnn_forward.1} parent=1 // pred_region
      %28 = dma.done [#allocation3], 1280
    $region17: #{cnn_forward.1} parent=1 // pred_fallthru
      _
    %v30 = vld [vmem:[%s0] sm:$0xff]
    %v31 = vpack.c.bf16 %v30, %v30
    %v32 = vld [vmem:[#allocation2] sm:$0xf]
    %v33 = vld [vmem:[#allocation2 + $0x4] sm:$0xf]
    %v34 = vld [vmem:[#allocation2 + $0x8] sm:$0xf]
    %v35 = vld [vmem:[#allocation2 + $0xc] sm:$0xf]
    %v36 = vld [vmem:[#allocation2 + $0x10] sm:$0xf]
    %v37 = vld [vmem:[#allocation2 + $0x14] sm:$0xf]
    %v38 = vld [vmem:[#allocation2 + $0x18] sm:$0xf]
    %v39 = vld [vmem:[#allocation2 + $0x1c] sm:$0xf]
    %v40 = vld [vmem:[#allocation2 + $0x20] sm:$0xf]
    %v41 = vld [vmem:[#allocation2 + $0x24] sm:$0xf]
    %v42 = vld [vmem:[#allocation2 + $0x28] sm:$0xf]
    %v43 = vld [vmem:[#allocation2 + $0x2c] sm:$0xf]
    %v44 = vld [vmem:[#allocation2 + $0x30] sm:$0xf]
    %v45 = vld [vmem:[#allocation2 + $0x34] sm:$0xf]
    %v46 = vld [vmem:[#allocation2 + $0x38] sm:$0xf]
    %v47 = vld [vmem:[#allocation2 + $0x3c] sm:$0xf]
    %v48 = vld [vmem:[#allocation2 + $0x40] sm:$0xf]
    %v49 = vld [vmem:[#allocation2 + $0x44] sm:$0xf]
    %v50 = vld [vmem:[#allocation2 + $0x48] sm:$0xf]
    %v51 = vld [vmem:[#allocation2 + $0x4c] sm:$0xf]
    %v52 = vld [vmem:[%s2] sm:$0xf]
    %v53 = vlaneseq
    %v54 = vshrl.u32 %v53, 7
    %v55 = vsub.s32 0, %v54
    %v56 = vrot.slane %v52, %v55
    %v61 = vunpack.c.l.b16 %v32
    %v62 = vunpack.c.l.b16 %v33
    %v63 = vunpack.c.l.b16 %v34
    %v64 = vunpack.c.l.b16 %v35
    %v65 = vpack.c.b16 %v62, %v61
    %v66 = vpack.c.b16 %v64, %v63
    %vm69 = vcmask 261120
    %v71 = vsel %vm69, %v31, 0
    %73 = vmatprep.subr.bf16.mxu0 0
    %74 = vmatpush1.bf16.msra.mxu0 0
    %75 = vmatprep.subr.bf16.mxu0 0
    %76 = vmatpush1.bf16.msra.mxu0 0
    %77 = vmatprep.subr.bf16.mxu0 0
    %78 = vmatpush1.bf16.msra.mxu0 0
    %79 = vmatprep.subr.bf16.mxu0 0
    %80 = vmatpush1.bf16.msra.mxu0 0
    %81 = vmatprep.subr.bf16.mxu0 0
    %82 = vmatpush1.bf16.msra.mxu0 0
    %83 = vmatprep.subr.bf16.mxu0 0
    %84 = vmatpush1.bf16.msra.mxu0 0
    %85 = vmatprep.subr.bf16.mxu0 0
    %86 = vmatpush1.bf16.msra.mxu0 %v66
    %87 = vmatprep.subr.bf16.mxu0 0
    %88 = vmatpush1.bf16.msra.mxu0 %v65
    %89 = vmatprep.subr.bf16.mxu0 0
    %90 = vmatpush2.bf16.msra.mxu0 0
    %91 = vmatprep.subr.bf16.mxu0 0
    %92 = vmatpush2.bf16.msra.mxu0 0
    %93 = vmatprep.subr.bf16.mxu0 0
    %94 = vmatpush2.bf16.msra.mxu0 0
    %95 = vmatprep.subr.bf16.mxu0 0
    %96 = vmatpush2.bf16.msra.mxu0 0
    %97 = vmatprep.subr.bf16.mxu0 0
    %98 = vmatpush2.bf16.msra.mxu0 0
    %99 = vmatprep.subr.bf16.mxu0 0
    %100 = vmatpush2.bf16.msra.mxu0 0
    %101 = vmatprep.subr.bf16.mxu0 0
    %102 = vmatpush2.bf16.msra.mxu0 0
    %103 = vmatprep.subr.bf16.mxu0 0
    %104 = vmatpush2.bf16.msra.mxu0 0
    %105 = vmatprep.mubr.bf16.mxu0 0
    %106 = vmatmul.mubr.bf16.gmra.mxu0 %v71
    %v107 = vpop.f32.mrf.mxu0
    %v108 = vadd.f32 %v56, %v107
    %v109 = vpop.f32.mrf.mxu0
    %v110 = vpop.f32.mrf.mxu0
    %v111 = vpop.f32.mrf.mxu0
    %112 = vdwg.mxu0
    %v113 = vmax.f32 %v108, 0.0
    %v114 = vrot.slane %v113, 4
    %v115 = vadd.f32 %v113, %v114
    %v116 = vrot.slane %v115, 2
    %v117 = vadd.f32 %v115, %v116
    %v118 = vrot.slane %v117, 1
    %v119 = vadd.f32 %v117, %v118
    %v120 = vmul.f32 %v119, 0.125
    %v121 = vsub.f32 %v113, %v120
    %v122 = vmul.f32 %v121, %v121
    %v123 = vrot.slane %v122, 4
    %v124 = vadd.f32 %v122, %v123
    %v125 = vrot.slane %v124, 2
    %v126 = vadd.f32 %v124, %v125
    %v127 = vrot.slane %v126, 1
    %v128 = vadd.f32 %v126, %v127
    %v129 = vmul.f32 %v128, 0.125
    %v130 = vadd.f32 %v129, 1e-05
    %v131 = vrsqrt.pop %v130
    %v132 = vmul.f32 %v121, %v131
    %v133 = vlaneseq
    %v134 = vshrl.u32 %v133, 7
    %v135 = vsub.s32 1, %v134
    %v136 = vrot.slane %v52, %v135
    %v137 = vmul.f32 %v132, %v136
    %v138 = vlaneseq
    %v139 = vshrl.u32 %v138, 7
    %v140 = vsub.s32 2, %v139
    %v141 = vrot.slane %v52, %v140
    %v142 = vadd.f32 %v137, %v141
    %v143 = vpack.c.bf16 %v142, %v142
    %v144 = vlaneseq
    %v145 = vshrl.u32 %v144, 7
    %v146 = vsub.s32 3, %v145
    %v147 = vrot.slane %v52, %v146
    %v164 = vunpack.c.l.b16 %v36
    %v165 = vunpack.c.l.b16 %v37
    %v166 = vunpack.c.l.b16 %v38
    %v167 = vunpack.c.l.b16 %v39
    %v168 = vunpack.c.l.b16 %v40
    %v169 = vunpack.c.l.b16 %v41
    %v170 = vunpack.c.l.b16 %v42
    %v171 = vunpack.c.l.b16 %v43
    %v172 = vunpack.c.l.b16 %v44
    %v173 = vunpack.c.l.b16 %v45
    %v174 = vunpack.c.l.b16 %v46
    %v175 = vunpack.c.l.b16 %v47
    %v176 = vunpack.c.l.b16 %v48
    %v177 = vunpack.c.l.b16 %v49
    %v178 = vunpack.c.l.b16 %v50
    %v179 = vunpack.c.l.b16 %v51
    %v180 = vpack.c.b16 %v165, %v164
    %v181 = vpack.c.b16 %v167, %v166
    %v182 = vpack.c.b16 %v169, %v168
    %v183 = vpack.c.b16 %v171, %v170
    %v184 = vpack.c.b16 %v173, %v172
    %v185 = vpack.c.b16 %v175, %v174
    %v186 = vpack.c.b16 %v177, %v176
    %v187 = vpack.c.b16 %v179, %v178
    %196 = vmatprep.subr.bf16.mxu0 0
    %197 = vmatpush1.bf16.msra.mxu0 %v187
    %198 = vmatprep.subr.bf16.mxu0 0
    %199 = vmatpush1.bf16.msra.mxu0 %v186
    %200 = vmatprep.subr.bf16.mxu0 0
    %201 = vmatpush1.bf16.msra.mxu0 %v185
    %202 = vmatprep.subr.bf16.mxu0 0
    %203 = vmatpush1.bf16.msra.mxu0 %v184
    %204 = vmatprep.subr.bf16.mxu0 0
    %205 = vmatpush1.bf16.msra.mxu0 %v183
    %206 = vmatprep.subr.bf16.mxu0 0
    %207 = vmatpush1.bf16.msra.mxu0 %v182
    %208 = vmatprep.subr.bf16.mxu0 0
    %209 = vmatpush1.bf16.msra.mxu0 %v181
    %210 = vmatprep.subr.bf16.mxu0 0
    %211 = vmatpush1.bf16.msra.mxu0 %v180
    %212 = vmatprep.subr.bf16.mxu0 0
    %213 = vmatpush2.bf16.msra.mxu0 0
    %214 = vmatprep.subr.bf16.mxu0 0
    %215 = vmatpush2.bf16.msra.mxu0 0
    %216 = vmatprep.subr.bf16.mxu0 0
    %217 = vmatpush2.bf16.msra.mxu0 0
    %218 = vmatprep.subr.bf16.mxu0 0
    %219 = vmatpush2.bf16.msra.mxu0 0
    %220 = vmatprep.subr.bf16.mxu0 0
    %221 = vmatpush2.bf16.msra.mxu0 0
    %222 = vmatprep.subr.bf16.mxu0 0
    %223 = vmatpush2.bf16.msra.mxu0 0
    %224 = vmatprep.subr.bf16.mxu0 0
    %225 = vmatpush2.bf16.msra.mxu0 0
    %226 = vmatprep.subr.bf16.mxu0 0
    %227 = vmatpush2.bf16.msra.mxu0 0
    %228 = vmatprep.mubr.bf16.mxu0 0
    %229 = vmatmul.mubr.bf16.gmra.mxu0 %v143
    %v230 = vpop.f32.mrf.mxu0
    %v231 = vadd.f32 %v147, %v230
    %v232 = vpop.f32.mrf.mxu0
    %v233 = vpop.f32.mrf.mxu0
    %v234 = vpop.f32.mrf.mxu0
    %235 = vdwg.mxu0
    %v236 = vmax.f32 %v231, 0.0
    %237 = vst [vmem:[#allocation5] sm:$0xff] %v236
    // Predicated region
    $region18: #{cnn_forward.1} parent=1 // pred_check
      _
    $region19: #{cnn_forward.1} parent=1 // pred_check_branch
      %239 = sbr.rel (0) target = $region21
    $region20: #{cnn_forward.1} parent=1 // pred_region
      %s241 = ssub.s32 128, 128
      %242 = vsyncadd [#allocation4], %s241
      %s244 = sshll.u32 [#allocation5], 4
      %s245 = int_to_ptr.vmem [resolvable:$true] %s244
      %247 = dma.vmem_to_hbm [thread:$0]  %s245, 128, %s3, [#allocation4]
    $region21: #{cnn_forward.1} parent=1 // pred_fallthru
      _
    // Predicated region
    $region22: #{cnn_forward.1} parent=1 // pred_check
      _
    $region23: #{cnn_forward.1} parent=1 // pred_check_branch
      %249 = sbr.rel (0) target = $region25
    $region24: #{cnn_forward.1} parent=1 // pred_region
      %250 = dma.done [#allocation4], 128
    $region25: #{cnn_forward.1} parent=1 // pred_fallthru
      _
    %251 = vsyncpa [#allocation3], 1
    %252 = vsyncpa [#allocation4], 1

</llo_original>
